<compile_context>
chip_gen: v5e
topology: v5e:2x2
jax: 0.10.0
libtpu: 0.0.40
codegen_flags: <defaults>
</compile_context>

<pallas_src>
import jax
import jax.numpy as jnp
from jax.experimental import pallas as pl
from jax.experimental.pallas import tpu as pltpu


def _ace_kernel(x_ref, wg_ref, bg_ref, mf_ref, cf_ref, s_ref, bc_ref, o_ref):
    x = x_ref[...]                       # (tm, D), io_dtype
    E = s_ref.shape[0]                   # max_expansion (static)
    D = o_ref.shape[-1]                  # dim (static)

    # --- gate logits --------------------------------------------------------
    g = jnp.dot(x, wg_ref[...], preferred_element_type=jnp.float32) + bg_ref[...]

    # --- softmax over E (tiny) — unrolled pairwise max/add, no XLU reduce ----
    m = g[:, 0:1]
    for e in range(1, E):
        m = jnp.maximum(m, g[:, e:e + 1])
    p = jnp.exp(g - m)                   # (tm, E)
    denom = p[:, 0:1]
    for e in range(1, E):
        denom = denom + p[:, e:e + 1]
    r = pl.reciprocal(denom, approx=True)        # EUP
    r = r * (2.0 - denom * r)                    # one Newton step -> ~f32 accuracy
    ef = p * r                                   # (tm, E), f32

    # --- folded expansion∘compression: one lane-dense matmul to (tm, E*D) ----
    y = jnp.dot(x, mf_ref[...], preferred_element_type=jnp.float32) + cf_ref[...]

    # --- gating, lane-dense: broadcast ef over each expert's D lanes via MXU -
    gate_b = jnp.dot(ef, s_ref[...], preferred_element_type=jnp.float32)  # (tm, E*D)
    gy = y * gate_b                                                        # (tm, E*D)

    # --- reduce over experts: E-1 lane-aligned slice adds --------------------
    out = gy[:, 0:D]
    for e in range(1, E):
        out = out + gy[:, e * D:(e + 1) * D]
    out = out + bc_ref[...]
    o_ref[...] = out.astype(o_ref.dtype)


def adaptive_compression_expansion(x, params, *, dim: int, max_expansion: int,
                                   tm: int = 256, io_dtype=jnp.float32):
    """x: (..., dim). Returns (..., dim) in io_dtype."""
    lead_shape = x.shape[:-1]
    x2 = x.reshape(-1, dim)
    M = x2.shape[0]
    E = max_expansion
    f32 = jnp.float32
    hi = jax.lax.Precision.HIGHEST

    # Row tile: multiple of 8 sublanes, capped by `tm`; pad M to a multiple.
    m_pad8 = ((M + 7) // 8) * 8
    tm_eff = max(8, (min(tm, m_pad8) // 8) * 8)
    n_tiles = pl.cdiv(M, tm_eff)
    M_pad = n_tiles * tm_eff
    if M_pad != M:
        x2 = jnp.pad(x2, ((0, M_pad - M), (0, 0)))
    x2 = x2.astype(io_dtype)

    # --- parameter preprocessing (host side, done once; weights VMEM-resident)
    wg_t = params["gate_w"].T.astype(io_dtype)                  # (D, E)
    bg = params["gate_b"].reshape(1, E).astype(f32)             # (1, E)
    wc_t = params["compression_w"].T[:dim, :].astype(f32)       # (D, D) first D in-features
    we_t = params["expansion_w"].T.astype(f32)                  # (D, E*D)
    # Fold compression into expansion: M_flat[:, e*D:(e+1)*D] = We_e.T @ Wc_slice.T
    m_fold = jnp.einsum("dek,kf->def", we_t.reshape(dim, E, dim), wc_t,
                        precision=hi).reshape(dim, E * dim).astype(io_dtype)
    c_fold = jnp.einsum("ek,kf->ef",
                        params["expansion_b"].reshape(E, dim).astype(f32), wc_t,
                        precision=hi).reshape(1, E * dim).astype(f32)
    bc = params["compression_b"].reshape(1, dim).astype(f32)    # (1, D)
    # Block selection matrix: row e = ones over expert e's D lanes (0/1, exact).
    sel = jnp.repeat(jnp.eye(E, dtype=f32), dim, axis=1)        # (E, E*D)

    full = lambda a: pl.BlockSpec(a.shape, lambda i: (0, 0))

    out = pl.pallas_call(
        _ace_kernel,
        out_shape=jax.ShapeDtypeStruct((M_pad, dim), io_dtype),
        grid_spec=pltpu.PrefetchScalarGridSpec(
            num_scalar_prefetch=0,
            grid=(n_tiles,),
            in_specs=[
                pl.BlockSpec((tm_eff, dim), lambda i: (i, 0)),   # x row tiles
                full(wg_t), full(bg),
                full(m_fold), full(c_fold),
                full(sel), full(bc),
            ],
            out_specs=pl.BlockSpec((tm_eff, dim), lambda i: (i, 0)),
        ),
        compiler_params=pltpu.CompilerParams(
            dimension_semantics=("parallel",),
            vmem_limit_bytes=64 * 1024 * 1024,
        ),
    )(x2, wg_t, bg, m_fold, c_fold, sel, bc)

    out = out[:M]
    return out.reshape(*lead_shape, dim)


def _init_params(key, dim, max_expansion):
    ks = jax.random.split(key, 6)

    def lin(kw, kb, fan_in, fan_out):
        bound = 1.0 / jnp.sqrt(fan_in)
        w = jax.random.uniform(kw, (fan_out, fan_in), jnp.float32, -bound, bound)
        b = jax.random.uniform(kb, (fan_out,), jnp.float32, -bound, bound)
        return w, b

    cw, cb = lin(ks[0], ks[1], dim * max_expansion, dim)   # compression
    ew, eb = lin(ks[2], ks[3], dim, dim * max_expansion)   # expansion
    gw, gb = lin(ks[4], ks[5], dim, max_expansion)         # gate
    return {
        "compression_w": cw, "compression_b": cb,
        "expansion_w": ew, "expansion_b": eb,
        "gate_w": gw, "gate_b": gb,
    }


def _reference(x, params, *, dim, max_expansion):
    ef = jax.nn.softmax(x @ params["gate_w"].T + params["gate_b"], axis=-1)
    expanded = (x @ params["expansion_w"].T + params["expansion_b"]).reshape(
        *x.shape[:-1], max_expansion, dim)
    gated = jnp.sum(expanded * ef[..., None], axis=-2)
    wc = params["compression_w"][:, :dim]
    return gated @ wc.T + params["compression_b"]


if __name__ == "__main__":
    dim = 32
    max_expansion = 4
    key = jax.random.PRNGKey(0)
    k_x, k_p = jax.random.split(key)

    x = jax.random.normal(k_x, (2, 8, dim), jnp.float32)   # (batch=2, seq=8, hidden=32)
    params = _init_params(k_p, dim, max_expansion)
    ref = _reference(x, params, dim=dim, max_expansion=max_expansion)

    # f32 I/O, small tm so the grid actually has >1 step (exercises pipelining path).
    out = adaptive_compression_expansion(
        x, params, dim=dim, max_expansion=max_expansion, tm=8, io_dtype=jnp.float32)
    out = jax.block_until_ready(out)
    assert out.shape == (2, 8, dim)
    assert jnp.allclose(out, ref, atol=2e-3, rtol=2e-3), "f32 mismatch vs reference"

    # bf16 I/O path (bandwidth-optimized for large shapes); loose check vs f32 ref.
    out_bf16 = adaptive_compression_expansion(
        x, params, dim=dim, max_expansion=max_expansion, tm=8, io_dtype=jnp.bfloat16)
    out_bf16 = jax.block_until_ready(out_bf16)
    assert out_bf16.shape == (2, 8, dim)
    assert bool(jnp.all(jnp.isfinite(out_bf16.astype(jnp.float32))))
    assert jnp.allclose(out_bf16.astype(jnp.float32), ref, atol=1e-1, rtol=1e-1), \
        "bf16 mismatch vs reference"

    print("KERNEL_OK")
</pallas_src>

<mosaic_0001>
module attributes {stable_mosaic.version = 11 : i64} {
  func.func @_ace_kernel(%arg0: i32, %arg1: memref<8x32xf32, #tpu.memory_space<vmem>>, %arg2: memref<32x4xf32, #tpu.memory_space<vmem>>, %arg3: memref<1x4xf32, #tpu.memory_space<vmem>>, %arg4: memref<32x128xf32, #tpu.memory_space<vmem>>, %arg5: memref<1x128xf32, #tpu.memory_space<vmem>>, %arg6: memref<4x128xf32, #tpu.memory_space<vmem>>, %arg7: memref<1x32xf32, #tpu.memory_space<vmem>>, %arg8: memref<8x32xf32, #tpu.memory_space<vmem>>) attributes {dimension_semantics = [#tpu.dimension_semantics<parallel>], iteration_bounds = array<i64: 2>, scalar_prefetch = 0 : i64, scratch_operands = 0 : i64, tpu.core_type = #tpu.core_type<tc>, window_params = [{transform_indices = @transform_0, window_bounds = array<i64: 8, 32>}, {pipeline_mode = #tpu.pipeline_mode<synchronous>, transform_indices = @transform_1, window_bounds = array<i64: 32, 4>}, {pipeline_mode = #tpu.pipeline_mode<synchronous>, transform_indices = @transform_2, window_bounds = array<i64: 1, 4>}, {pipeline_mode = #tpu.pipeline_mode<synchronous>, transform_indices = @transform_3, window_bounds = array<i64: 32, 128>}, {pipeline_mode = #tpu.pipeline_mode<synchronous>, transform_indices = @transform_4, window_bounds = array<i64: 1, 128>}, {pipeline_mode = #tpu.pipeline_mode<synchronous>, transform_indices = @transform_5, window_bounds = array<i64: 4, 128>}, {pipeline_mode = #tpu.pipeline_mode<synchronous>, transform_indices = @transform_6, window_bounds = array<i64: 1, 32>}, {transform_indices = @transform_7, window_bounds = array<i64: 8, 32>}]} {
    %c0 = arith.constant 0 : index
    %c0_0 = arith.constant 0 : index
    %0 = vector.load %arg1[%c0, %c0_0] : memref<8x32xf32, #tpu.memory_space<vmem>>, vector<8x32xf32>
    %c0_1 = arith.constant 0 : index
    %c0_2 = arith.constant 0 : index
    %1 = vector.load %arg2[%c0_1, %c0_2] : memref<32x4xf32, #tpu.memory_space<vmem>>, vector<32x4xf32>
    %cst = arith.constant dense<0.000000e+00> : vector<8x4xf32>
    %2 = tpu.matmul %0, %1, %cst {dimension_numbers = #tpu.dot_dimension_numbers<[1], [0], [0], [1], [0, 0, 1, 1], [], []>} : vector<8x32xf32>, vector<32x4xf32>, vector<8x4xf32> -> vector<8x4xf32>
    %c0_3 = arith.constant 0 : index
    %c0_4 = arith.constant 0 : index
    %3 = vector.load %arg3[%c0_3, %c0_4] : memref<1x4xf32, #tpu.memory_space<vmem>>, vector<1x4xf32>
    %4 = vector.broadcast %3 : vector<1x4xf32> to vector<8x4xf32>
    %5 = arith.addf %2, %4 : vector<8x4xf32>
    %6 = vector.extract_strided_slice %5 {offsets = [0, 0], sizes = [8, 1], strides = [1, 1]} : vector<8x4xf32> to vector<8x1xf32>
    %7 = vector.extract_strided_slice %5 {offsets = [0, 1], sizes = [8, 1], strides = [1, 1]} : vector<8x4xf32> to vector<8x1xf32>
    %8 = arith.maximumf %6, %7 : vector<8x1xf32>
    %9 = vector.extract_strided_slice %5 {offsets = [0, 2], sizes = [8, 1], strides = [1, 1]} : vector<8x4xf32> to vector<8x1xf32>
    %10 = arith.maximumf %8, %9 : vector<8x1xf32>
    %11 = vector.extract_strided_slice %5 {offsets = [0, 3], sizes = [8, 1], strides = [1, 1]} : vector<8x4xf32> to vector<8x1xf32>
    %12 = arith.maximumf %10, %11 : vector<8x1xf32>
    %13 = vector.broadcast %12 : vector<8x1xf32> to vector<8x4xf32>
    %14 = arith.subf %5, %13 : vector<8x4xf32>
    %15 = math.exp %14 : vector<8x4xf32>
    %16 = vector.extract_strided_slice %15 {offsets = [0, 0], sizes = [8, 1], strides = [1, 1]} : vector<8x4xf32> to vector<8x1xf32>
    %17 = vector.extract_strided_slice %15 {offsets = [0, 1], sizes = [8, 1], strides = [1, 1]} : vector<8x4xf32> to vector<8x1xf32>
    %18 = arith.addf %16, %17 : vector<8x1xf32>
    %19 = vector.extract_strided_slice %15 {offsets = [0, 2], sizes = [8, 1], strides = [1, 1]} : vector<8x4xf32> to vector<8x1xf32>
    %20 = arith.addf %18, %19 : vector<8x1xf32>
    %21 = vector.extract_strided_slice %15 {offsets = [0, 3], sizes = [8, 1], strides = [1, 1]} : vector<8x4xf32> to vector<8x1xf32>
    %22 = arith.addf %20, %21 : vector<8x1xf32>
    %23 = tpu.reciprocal %22 {approx = true} : vector<8x1xf32> -> vector<8x1xf32>
    %24 = arith.mulf %22, %23 : vector<8x1xf32>
    %cst_5 = arith.constant 2.000000e+00 : f32
    %25 = vector.broadcast %cst_5 : f32 to vector<8x1xf32>
    %26 = arith.subf %25, %24 : vector<8x1xf32>
    %27 = arith.mulf %23, %26 : vector<8x1xf32>
    %28 = vector.broadcast %27 : vector<8x1xf32> to vector<8x4xf32>
    %29 = arith.mulf %15, %28 : vector<8x4xf32>
    %c0_6 = arith.constant 0 : index
    %c0_7 = arith.constant 0 : index
    %30 = vector.load %arg4[%c0_6, %c0_7] : memref<32x128xf32, #tpu.memory_space<vmem>>, vector<32x128xf32>
    %cst_8 = arith.constant dense<0.000000e+00> : vector<8x128xf32>
    %31 = tpu.matmul %0, %30, %cst_8 {dimension_numbers = #tpu.dot_dimension_numbers<[1], [0], [0], [1], [0, 0, 1, 1], [], []>} : vector<8x32xf32>, vector<32x128xf32>, vector<8x128xf32> -> vector<8x128xf32>
    %c0_9 = arith.constant 0 : index
    %c0_10 = arith.constant 0 : index
    %32 = vector.load %arg5[%c0_9, %c0_10] : memref<1x128xf32, #tpu.memory_space<vmem>>, vector<1x128xf32>
    %33 = vector.broadcast %32 : vector<1x128xf32> to vector<8x128xf32>
    %34 = arith.addf %31, %33 : vector<8x128xf32>
    %c0_11 = arith.constant 0 : index
    %c0_12 = arith.constant 0 : index
    %35 = vector.load %arg6[%c0_11, %c0_12] : memref<4x128xf32, #tpu.memory_space<vmem>>, vector<4x128xf32>
    %cst_13 = arith.constant dense<0.000000e+00> : vector<8x128xf32>
    %36 = tpu.matmul %29, %35, %cst_13 {dimension_numbers = #tpu.dot_dimension_numbers<[1], [0], [0], [1], [0, 0, 1, 1], [], []>} : vector<8x4xf32>, vector<4x128xf32>, vector<8x128xf32> -> vector<8x128xf32>
    %37 = arith.mulf %34, %36 : vector<8x128xf32>
    %38 = vector.extract_strided_slice %37 {offsets = [0, 0], sizes = [8, 32], strides = [1, 1]} : vector<8x128xf32> to vector<8x32xf32>
    %39 = vector.extract_strided_slice %37 {offsets = [0, 32], sizes = [8, 32], strides = [1, 1]} : vector<8x128xf32> to vector<8x32xf32>
    %40 = arith.addf %38, %39 : vector<8x32xf32>
    %41 = vector.extract_strided_slice %37 {offsets = [0, 64], sizes = [8, 32], strides = [1, 1]} : vector<8x128xf32> to vector<8x32xf32>
    %42 = arith.addf %40, %41 : vector<8x32xf32>
    %43 = vector.extract_strided_slice %37 {offsets = [0, 96], sizes = [8, 32], strides = [1, 1]} : vector<8x128xf32> to vector<8x32xf32>
    %44 = arith.addf %42, %43 : vector<8x32xf32>
    %c0_14 = arith.constant 0 : index
    %c0_15 = arith.constant 0 : index
    %45 = vector.load %arg7[%c0_14, %c0_15] : memref<1x32xf32, #tpu.memory_space<vmem>>, vector<1x32xf32>
    %46 = vector.broadcast %45 : vector<1x32xf32> to vector<8x32xf32>
    %47 = arith.addf %44, %46 : vector<8x32xf32>
    %c0_16 = arith.constant 0 : index
    %c0_17 = arith.constant 0 : index
    %48 = vector.load %arg8[%c0_16, %c0_17] : memref<8x32xf32, #tpu.memory_space<vmem>>, vector<8x32xf32>
    tpu.vector_store %arg8[%c0_16, %c0_17], %47 {strides = array<i32>} : memref<8x32xf32, #tpu.memory_space<vmem>>, vector<8x32xf32>,
    return
  }
  func.func @transform_0(%arg0: i32) -> (i32, i32) {
    %c0_i32 = arith.constant 0 : i32
    %c0_i32_0 = arith.constant 0 : i32
    return %arg0, %c0_i32 : i32, i32
  }
  func.func @transform_1(%arg0: i32) -> (i32, i32) {
    %c0_i32 = arith.constant 0 : i32
    %c0_i32_0 = arith.constant 0 : i32
    %c0_i32_1 = arith.constant 0 : i32
    return %c0_i32, %c0_i32_0 : i32, i32
  }
  func.func @transform_2(%arg0: i32) -> (i32, i32) {
    %c0_i32 = arith.constant 0 : i32
    %c0_i32_0 = arith.constant 0 : i32
    %c0_i32_1 = arith.constant 0 : i32
    return %c0_i32, %c0_i32_0 : i32, i32
  }
  func.func @transform_3(%arg0: i32) -> (i32, i32) {
    %c0_i32 = arith.constant 0 : i32
    %c0_i32_0 = arith.constant 0 : i32
    %c0_i32_1 = arith.constant 0 : i32
    return %c0_i32, %c0_i32_0 : i32, i32
  }
  func.func @transform_4(%arg0: i32) -> (i32, i32) {
    %c0_i32 = arith.constant 0 : i32
    %c0_i32_0 = arith.constant 0 : i32
    %c0_i32_1 = arith.constant 0 : i32
    return %c0_i32, %c0_i32_0 : i32, i32
  }
  func.func @transform_5(%arg0: i32) -> (i32, i32) {
    %c0_i32 = arith.constant 0 : i32
    %c0_i32_0 = arith.constant 0 : i32
    %c0_i32_1 = arith.constant 0 : i32
    return %c0_i32, %c0_i32_0 : i32, i32
  }
  func.func @transform_6(%arg0: i32) -> (i32, i32) {
    %c0_i32 = arith.constant 0 : i32
    %c0_i32_0 = arith.constant 0 : i32
    %c0_i32_1 = arith.constant 0 : i32
    return %c0_i32, %c0_i32_0 : i32, i32
  }
  func.func @transform_7(%arg0: i32) -> (i32, i32) {
    %c0_i32 = arith.constant 0 : i32
    %c0_i32_0 = arith.constant 0 : i32
    return %arg0, %c0_i32 : i32, i32
  }
}

</mosaic_0001>

<llo_original>
// kernel: tpu_custom_call.1
$region0: #{tpu_custom_call.1}
  #allocation0 [shape = 'u32[]', space=smem, size = 0x4, offset = 0x4, fixed_abs, tag = 'smem constant byte address 0x4 - core index']
  #allocation1 [shape = 'u32[72,128]{1,0:T(1,128)}', space=vmem, size = 0x9000, scoped, tag = 'internal scratch']
  %s0 = inlined_call_operand.hbm [shape: f32[16,32], index: 0, kind: input, shape index: {}]
  %s1 = inlined_call_operand.vmem [shape: f32[32,4], index: 1, kind: input, shape index: {}]
  %s2 = inlined_call_operand.vmem [shape: f32[1,4], index: 2, kind: input, shape index: {}]
  %s3 = inlined_call_operand.vmem [shape: f32[32,128], index: 3, kind: input, shape index: {}]
  %s4 = inlined_call_operand.vmem [shape: f32[1,128], index: 4, kind: input, shape index: {}]
  %s5 = inlined_call_operand.vmem [shape: f32[4,128], index: 5, kind: input, shape index: {}]
  %s6 = inlined_call_operand.vmem [shape: f32[1,32], index: 6, kind: input, shape index: {}]
  %s7 = inlined_call_operand.hbm [shape: f32[16,32], index: 7, kind: output, shape index: {}]
  %s8 = sld [smem:[#allocation0]]
  $region65: #{tpu_custom_call.1} parent=0
    _
  %s10 = ssub.s32 1, %s8
  %s11 = scalar_select 0, %s10, %s8
  $region1: #{tpu_custom_call.1} parent=0
    #allocation2 [shape = 'u8[8192]{0}', space=vmem, size = 0x2000, scoped, tag = 'input window, operand 0']
    #allocation3 [shape = 's32[2]{0}', space=sflag, size = 0x8, scoped, tag = 'scoped memory for tpu_custom_call.1']
    #allocation4 [shape = 's32[2]{0}', space=sflag, size = 0x8, scoped, tag = 'scoped memory for tpu_custom_call.1']
    #allocation5 [shape = 'u8[8192]{0}', space=vmem, size = 0x2000, scoped, tag = 'output window, operand 0']
    %12 = vsyncpa [#allocation3], 0
    %s13 = scalar_lea.sflag [#allocation3], 1
    %14 = vsyncpa %s13, 0
    %15 = vsyncpa [#allocation4], 0
    %s16 = scalar_lea.sflag [#allocation4], 1
    %17 = vsyncpa %s16, 0
    loop: start=0, step=1, limit=4
    $region2: #{tpu_custom_call.1} parent=1 // loop_pre_header
      _
    $region3: #{tpu_custom_call.1} parent=1 // loop_header
      %s19 = sphi 0, %s23
      %p20 = scmp.ge.s32.totalorder %s19, 4
      %s29 = sphi 0, %s31
      %s32 = sphi 0, %s29
      %s33 = sphi 0, %s32
      %s49 = sphi 0, %s33
      %s53 = sphi 0, %s53
      %s55 = sphi 0, %s53
      %s56 = sphi 0, %s55
      %s70 = sphi 0, %s56
      %s74 = sphi 0, %s74
      %s76 = sphi 0, %s74
      %s77 = sphi 0, %s76
      %s91 = sphi 0, %s77
      %s95 = sphi 0, %s95
      %s97 = sphi 0, %s95
      %s98 = sphi 0, %s97
      %s112 = sphi 0, %s98
      %s116 = sphi 0, %s116
      %s118 = sphi 0, %s116
      %s119 = sphi 0, %s118
      %s133 = sphi 0, %s119
      %s137 = sphi 0, %s137
      %s139 = sphi 0, %s137
      %s140 = sphi 0, %s139
      %s154 = sphi 0, %s140
      %s158 = sphi 0, %s158
      %s160 = sphi 0, %s158
      %s161 = sphi 0, %s160
      %s175 = sphi 0, %s161
      %s181 = sphi 0, %s183
      %s184 = sphi 0, %s181
      %s185 = sphi 0, %s184
      %s201 = sphi 0, %s185
    $region4: #{tpu_custom_call.1} parent=1 // loop_header_branch
      %22 = sbr.rel (%p20) target = $region8
    $region5: #{tpu_custom_call.1} parent=1 // loop_body
      %s24 = ssub.s32 %s19, 1
      %s25 = ssub.s32 %s19, 2
      %s26 = sadd.s32 %s19, 1
      %s27 = ssub.s32 %s19, %s26
      %p28 = scmp.eq.s32.totalorder %s27, 0
      %s30 = sadd.s32 %s29, 1
      %s31 = scalar_select %p28, %s29, %s30
      %p34 = pneg %p28
      %p35 = scmp.eq.s32.totalorder %s19, 1
      %p36 = por %p34, %p35
      %p37 = scmp.ne.s32.totalorder %s29, %s32
      %p38 = scmp.eq.s32.totalorder %s19, 0
      %p39 = por %p37, %p38
      %p40 = scmp.ne.s32.totalorder %s29, %s32
      %p41 = scmp.eq.s32.totalorder %s24, 1
      %p42 = por %p40, %p41
      %p43 = scmp.ne.s32.totalorder %s32, %s33
      %p44 = scmp.eq.s32.totalorder %s24, 0
      %p45 = por %p43, %p44
      %p46 = scmp.ne.s32.totalorder %s32, %s33
      %p47 = scmp.eq.s32.totalorder %s25, 1
      %p48 = por %p46, %p47
      %p50 = scmp.ne.s32.totalorder %s33, %s49
      %p51 = scmp.eq.s32.totalorder %s25, 0
      %p52 = por %p50, %p51
      %s54 = sadd.s32 %s53, 1
      %p57 = scmp.eq.s32.totalorder %s19, 1
      %p58 = scmp.ne.s32.totalorder %s53, %s55
      %p59 = scmp.eq.s32.totalorder %s19, 0
      %p60 = por %p58, %p59
      %p61 = scmp.ne.s32.totalorder %s53, %s55
      %p62 = scmp.eq.s32.totalorder %s24, 1
      %p63 = por %p61, %p62
      %p64 = scmp.ne.s32.totalorder %s55, %s56
      %p65 = scmp.eq.s32.totalorder %s24, 0
      %p66 = por %p64, %p65
      %p67 = scmp.ne.s32.totalorder %s55, %s56
      %p68 = scmp.eq.s32.totalorder %s25, 1
      %p69 = por %p67, %p68
      %p71 = scmp.ne.s32.totalorder %s56, %s70
      %p72 = scmp.eq.s32.totalorder %s25, 0
      %p73 = por %p71, %p72
      %s75 = sadd.s32 %s74, 1
      %p78 = scmp.eq.s32.totalorder %s19, 1
      %p79 = scmp.ne.s32.totalorder %s74, %s76
      %p80 = scmp.eq.s32.totalorder %s19, 0
      %p81 = por %p79, %p80
      %p82 = scmp.ne.s32.totalorder %s74, %s76
      %p83 = scmp.eq.s32.totalorder %s24, 1
      %p84 = por %p82, %p83
      %p85 = scmp.ne.s32.totalorder %s76, %s77
      %p86 = scmp.eq.s32.totalorder %s24, 0
      %p87 = por %p85, %p86
      %p88 = scmp.ne.s32.totalorder %s76, %s77
      %p89 = scmp.eq.s32.totalorder %s25, 1
      %p90 = por %p88, %p89
      %p92 = scmp.ne.s32.totalorder %s77, %s91
      %p93 = scmp.eq.s32.totalorder %s25, 0
      %p94 = por %p92, %p93
      %s96 = sadd.s32 %s95, 1
      %p99 = scmp.eq.s32.totalorder %s19, 1
      %p100 = scmp.ne.s32.totalorder %s95, %s97
      %p101 = scmp.eq.s32.totalorder %s19, 0
      %p102 = por %p100, %p101
      %p103 = scmp.ne.s32.totalorder %s95, %s97
      %p104 = scmp.eq.s32.totalorder %s24, 1
      %p105 = por %p103, %p104
      %p106 = scmp.ne.s32.totalorder %s97, %s98
      %p107 = scmp.eq.s32.totalorder %s24, 0
      %p108 = por %p106, %p107
      %p109 = scmp.ne.s32.totalorder %s97, %s98
      %p110 = scmp.eq.s32.totalorder %s25, 1
      %p111 = por %p109, %p110
      %p113 = scmp.ne.s32.totalorder %s98, %s112
      %p114 = scmp.eq.s32.totalorder %s25, 0
      %p115 = por %p113, %p114
      %s117 = sadd.s32 %s116, 1
      %p120 = scmp.eq.s32.totalorder %s19, 1
      %p121 = scmp.ne.s32.totalorder %s116, %s118
      %p122 = scmp.eq.s32.totalorder %s19, 0
      %p123 = por %p121, %p122
      %p124 = scmp.ne.s32.totalorder %s116, %s118
      %p125 = scmp.eq.s32.totalorder %s24, 1
      %p126 = por %p124, %p125
      %p127 = scmp.ne.s32.totalorder %s118, %s119
      %p128 = scmp.eq.s32.totalorder %s24, 0
      %p129 = por %p127, %p128
      %p130 = scmp.ne.s32.totalorder %s118, %s119
      %p131 = scmp.eq.s32.totalorder %s25, 1
      %p132 = por %p130, %p131
      %p134 = scmp.ne.s32.totalorder %s119, %s133
      %p135 = scmp.eq.s32.totalorder %s25, 0
      %p136 = por %p134, %p135
      %s138 = sadd.s32 %s137, 1
      %p141 = scmp.eq.s32.totalorder %s19, 1
      %p142 = scmp.ne.s32.totalorder %s137, %s139
      %p143 = scmp.eq.s32.totalorder %s19, 0
      %p144 = por %p142, %p143
      %p145 = scmp.ne.s32.totalorder %s137, %s139
      %p146 = scmp.eq.s32.totalorder %s24, 1
      %p147 = por %p145, %p146
      %p148 = scmp.ne.s32.totalorder %s139, %s140
      %p149 = scmp.eq.s32.totalorder %s24, 0
      %p150 = por %p148, %p149
      %p151 = scmp.ne.s32.totalorder %s139, %s140
      %p152 = scmp.eq.s32.totalorder %s25, 1
      %p153 = por %p151, %p152
      %p155 = scmp.ne.s32.totalorder %s140, %s154
      %p156 = scmp.eq.s32.totalorder %s25, 0
      %p157 = por %p155, %p156
      %s159 = sadd.s32 %s158, 1
      %p162 = scmp.eq.s32.totalorder %s19, 1
      %p163 = scmp.ne.s32.totalorder %s158, %s160
      %p164 = scmp.eq.s32.totalorder %s19, 0
      %p165 = por %p163, %p164
      %p166 = scmp.ne.s32.totalorder %s158, %s160
      %p167 = scmp.eq.s32.totalorder %s24, 1
      %p168 = por %p166, %p167
      %p169 = scmp.ne.s32.totalorder %s160, %s161
      %p170 = scmp.eq.s32.totalorder %s24, 0
      %p171 = por %p169, %p170
      %p172 = scmp.ne.s32.totalorder %s160, %s161
      %p173 = scmp.eq.s32.totalorder %s25, 1
      %p174 = por %p172, %p173
      %p176 = scmp.ne.s32.totalorder %s161, %s175
      %p177 = scmp.eq.s32.totalorder %s25, 0
      %p178 = por %p176, %p177
      %s179 = ssub.s32 %s19, %s26
      %p180 = scmp.eq.s32.totalorder %s179, 0
      %s182 = sadd.s32 %s181, 1
      %s183 = scalar_select %p180, %s181, %s182
      %p186 = pneg %p180
      %p187 = scmp.eq.s32.totalorder %s19, 1
      %p188 = por %p186, %p187
      %p189 = scmp.ne.s32.totalorder %s181, %s184
      %p190 = scmp.eq.s32.totalorder %s19, 0
      %p191 = por %p189, %p190
      %p192 = scmp.ne.s32.totalorder %s181, %s184
      %p193 = scmp.eq.s32.totalorder %s24, 1
      %p194 = por %p192, %p193
      %p195 = scmp.ne.s32.totalorder %s184, %s185
      %p196 = scmp.eq.s32.totalorder %s24, 0
      %p197 = por %p195, %p196
      %p198 = scmp.ne.s32.totalorder %s184, %s185
      %p199 = scmp.eq.s32.totalorder %s25, 1
      %p200 = por %p198, %p199
      %p202 = scmp.ne.s32.totalorder %s185, %s201
      %p203 = scmp.eq.s32.totalorder %s25, 0
      %p204 = por %p202, %p203
      %p205 = scmp.le.s32.totalorder 1, %s19
      %p206 = scmp.lt.s32.totalorder %s19, 3
      %p207 = pnand %p205, %p206
      %p208 = pneg %p207
      // Predicated region
      $region9: #{tpu_custom_call.1} parent=5 // pred_check
        _
      $region10: #{tpu_custom_call.1} parent=5 // pred_check_branch
        %210 = sbr.rel (%p207) target = $region12
      $region11: #{tpu_custom_call.1} parent=5 // pred_region
        %s211 = ssub.s32 %s19, 1
        // Predicated region
        $region13: #{tpu_custom_call.1} parent=11 // pred_check
          %p212 = pneg %p66
        $region14: #{tpu_custom_call.1} parent=11 // pred_check_branch
          %214 = sbr.rel (%p212) target = $region16
        $region15: #{tpu_custom_call.1} parent=11 // pred_region
          _
        $region16: #{tpu_custom_call.1} parent=11 // pred_fallthru
          _
        // Predicated region
        $region17: #{tpu_custom_call.1} parent=11 // pred_check
          %p215 = pneg %p87
        $region18: #{tpu_custom_call.1} parent=11 // pred_check_branch
          %217 = sbr.rel (%p215) target = $region20
        $region19: #{tpu_custom_call.1} parent=11 // pred_region
          _
        $region20: #{tpu_custom_call.1} parent=11 // pred_fallthru
          _
        // Predicated region
        $region21: #{tpu_custom_call.1} parent=11 // pred_check
          %p218 = pneg %p108
        $region22: #{tpu_custom_call.1} parent=11 // pred_check_branch
          %220 = sbr.rel (%p218) target = $region24
        $region23: #{tpu_custom_call.1} parent=11 // pred_region
          _
        $region24: #{tpu_custom_call.1} parent=11 // pred_fallthru
          _
        // Predicated region
        $region25: #{tpu_custom_call.1} parent=11 // pred_check
          %p221 = pneg %p129
        $region26: #{tpu_custom_call.1} parent=11 // pred_check_branch
          %223 = sbr.rel (%p221) target = $region28
        $region27: #{tpu_custom_call.1} parent=11 // pred_region
          _
        $region28: #{tpu_custom_call.1} parent=11 // pred_fallthru
          _
        // Predicated region
        $region29: #{tpu_custom_call.1} parent=11 // pred_check
          %p224 = pneg %p150
        $region30: #{tpu_custom_call.1} parent=11 // pred_check_branch
          %226 = sbr.rel (%p224) target = $region32
        $region31: #{tpu_custom_call.1} parent=11 // pred_region
          _
        $region32: #{tpu_custom_call.1} parent=11 // pred_fallthru
          _
        // Predicated region
        $region33: #{tpu_custom_call.1} parent=11 // pred_check
          %p227 = pneg %p171
        $region34: #{tpu_custom_call.1} parent=11 // pred_check_branch
          %229 = sbr.rel (%p227) target = $region36
        $region35: #{tpu_custom_call.1} parent=11 // pred_region
          _
        $region36: #{tpu_custom_call.1} parent=11 // pred_fallthru
          _
      $region12: #{tpu_custom_call.1} parent=5 // pred_fallthru
        _
      %p230 = scmp.lt.s32.totalorder %s19, 2
      // Predicated region
      $region37: #{tpu_custom_call.1} parent=5 // pred_check
        %p231 = pneg %p230
      $region38: #{tpu_custom_call.1} parent=5 // pred_check_branch
        %233 = sbr.rel (%p231) target = $region40
      $region39: #{tpu_custom_call.1} parent=5 // pred_region
        // Predicated region
        $region41: #{tpu_custom_call.1} parent=39 // pred_check
          %p234 = pneg %p39
        $region42: #{tpu_custom_call.1} parent=39 // pred_check_branch
          %236 = sbr.rel (%p234) target = $region44
        $region43: #{tpu_custom_call.1} parent=39 // pred_region
          %s237 = sand.u32 %s29, 1
          %s238 = scalar_lea.sflag [#allocation3], %s237
          %s239 = sand.u32 %s29, 1
          %s240 = smul.addr %s239, 8
          %s241 = scalar_lea.vmem [#allocation2], %s240
          %243 = vsyncadd %s238, 0
          %s244 = smul.addr %s19, 8
          %s245 = scalar_lea.hbm %s0, %s244
          %s247 = sshll.u32 %s245, 4
          %s248 = int_to_ptr.hbm [resolvable:$true] %s247
          %s249 = sshll.u32 %s241, 4
          %s250 = int_to_ptr.vmem [resolvable:$true] %s249
          %252 = dma.hbm_to_vmem [thread:$0]  %s248, 128, %s250, %s238
        $region44: #{tpu_custom_call.1} parent=39 // pred_fallthru
          _
      $region40: #{tpu_custom_call.1} parent=5 // pred_fallthru
        _
      %p253 = scmp.le.s32.totalorder 1, %s19
      %p254 = scmp.lt.s32.totalorder %s19, 3
      %p255 = pnand %p253, %p254
      %p256 = pneg %p255
      // Predicated region
      $region45: #{tpu_custom_call.1} parent=5 // pred_check
        _
      $region46: #{tpu_custom_call.1} parent=5 // pred_check_branch
        %258 = sbr.rel (%p255) target = $region48
      $region47: #{tpu_custom_call.1} parent=5 // pred_region
        %s259 = ssub.s32 %s19, 1
        %s260 = sand.u32 %s32, 1
        %s261 = scalar_lea.sflag [#allocation3], %s260
        %s262 = sand.u32 %s32, 1
        %s263 = smul.addr %s262, 8
        %s264 = scalar_lea.vmem [#allocation2], %s263
        // Predicated region
        $region49: #{tpu_custom_call.1} parent=47 // pred_check
          %p265 = pneg %p45
        $region50: #{tpu_custom_call.1} parent=47 // pred_check_branch
          %267 = sbr.rel (%p265) target = $region52
        $region51: #{tpu_custom_call.1} parent=47 // pred_region
          %269 = dma.done %s261, 128
        $region52: #{tpu_custom_call.1} parent=47 // pred_fallthru
          _
        %s270 = sand.u32 %s32, 1
        %s271 = scalar_lea.sflag [#allocation3], %s270
        %s272 = sand.u32 %s32, 1
        %s273 = smul.addr %s272, 8
        %s274 = scalar_lea.vmem [#allocation2], %s273
        %p275 = pneg %p45
        %p276 = pneg %p42
        %p277 = pneg %p66
        %p278 = pneg %p63
        %p279 = pneg %p87
        %p280 = pneg %p84
        %p281 = pneg %p108
        %p282 = pneg %p105
        %p283 = pneg %p129
        %p284 = pneg %p126
        %p285 = pneg %p150
        %p286 = pneg %p147
        %p287 = pneg %p171
        %p288 = pneg %p168
        %p289 = pneg %p197
        %p290 = pneg %p194
        %s291 = sand.u32 %s184, 1
        %s292 = scalar_lea.sflag [#allocation4], %s291
        %s293 = sand.u32 %s184, 1
        %s294 = smul.addr %s293, 8
        %s295 = scalar_lea.vmem [#allocation5], %s294
        %v296 = vld [vmem:[%s264] sm:$0xff]
        %v297 = vld [vmem:[%s1] sm:$0xff]
        %v298 = vld [vmem:[%s1 + $0x8] sm:$0xff]
        %v299 = vld [vmem:[%s1 + $0x10] sm:$0xff]
        %v300 = vld [vmem:[%s1 + $0x18] sm:$0xff]
        %v301 = vld [vmem:[%s2] sm:$0x1]
        %v303 = vperm.slane %v301, 0
        %vm305 = vcmask 261120
        %v307 = vsel %vm305, %v296, 0
        %309 = vmatpush.msra.mxu0 0.0
        %310 = vmatpush.msra.mxu0 0.0
        %311 = vmatpush.msra.mxu0 0.0
        %312 = vmatpush.msra.mxu0 0.0
        %313 = vmatpush.msra.mxu0 0.0
        %314 = vmatpush.msra.mxu0 0.0
        %315 = vmatpush.msra.mxu0 0.0
        %316 = vmatpush.msra.mxu0 0.0
        %317 = vmatpush.msra.mxu0 0.0
        %318 = vmatpush.msra.mxu0 0.0
        %319 = vmatpush.msra.mxu0 0.0
        %320 = vmatpush.msra.mxu0 0.0
        %321 = vmatpush.msra.mxu0 %v300
        %322 = vmatpush.msra.mxu0 %v299
        %323 = vmatpush.msra.mxu0 %v298
        %324 = vmatpush.msra.mxu0 %v297
        %325 = vmatmul.f32.gmra.mxu0 %v307
        %v326 = vpop.f32.mrf.mxu0
        %v327 = vadd.f32 %v303, %v326
        %328 = vdwg.mxu0
        %330 = vrot.lane.b32.xlu0 %v327, 127
        %v331 = vpop.permute.xlu0 %330
        %v333 = vmax.f32 %v327, %v331
        %334 = vrot.lane.b32.xlu0 %v327, 126
        %v335 = vpop.permute.xlu0 %334
        %v337 = vmax.f32 %v333, %v335
        %338 = vrot.lane.b32.xlu0 %v327, 125
        %v339 = vpop.permute.xlu0 %338
        %v341 = vmax.f32 %v337, %v339
        %343 = vset.pattern.permute.xlu0 0
        %344 = vperm.xlu0 %343, %v341
        %v345 = vpop.permute.xlu0 %344
        %v347 = vsub.f32 %v327, %v345
        %v348 = vmul.f32 %v347, 1.442695
        %v349 = vpow.pop %v348
        %351 = vrot.lane.b32.xlu0 %v349, 127
        %v352 = vpop.permute.xlu0 %351
        %v354 = vadd.f32 %v349, %v352
        %355 = vrot.lane.b32.xlu0 %v349, 126
        %v356 = vpop.permute.xlu0 %355
        %v358 = vadd.f32 %v354, %v356
        %359 = vrot.lane.b32.xlu0 %v349, 125
        %v360 = vpop.permute.xlu0 %359
        %v362 = vadd.f32 %v358, %v360
        %v363 = vrcp.pop %v362
        %v364 = vmul.f32 %v362, %v363
        %v365 = vsub.f32 2.0, %v364
        %v366 = vmul.f32 %v363, %v365
        %368 = vset.pattern.permute.xlu0 0
        %369 = vperm.xlu0 %368, %v366
        %v370 = vpop.permute.xlu0 %369
        %v372 = vmul.f32 %v349, %v370
        %v373 = vld [vmem:[%s3] sm:$0xff]
        %v374 = vld [vmem:[%s3 + $0x8] sm:$0xff]
        %v375 = vld [vmem:[%s3 + $0x10] sm:$0xff]
        %v376 = vld [vmem:[%s3 + $0x18] sm:$0xff]
        %v377 = vld [vmem:[%s4] sm:$0x1]
        %v379 = vperm.slane %v377, 0
        %381 = vmatpush.msra.mxu0 0.0
        %382 = vmatpush.msra.mxu0 0.0
        %383 = vmatpush.msra.mxu0 0.0
        %384 = vmatpush.msra.mxu0 0.0
        %385 = vmatpush.msra.mxu0 0.0
        %386 = vmatpush.msra.mxu0 0.0
        %387 = vmatpush.msra.mxu0 0.0
        %388 = vmatpush.msra.mxu0 0.0
        %389 = vmatpush.msra.mxu0 0.0
        %390 = vmatpush.msra.mxu0 0.0
        %391 = vmatpush.msra.mxu0 0.0
        %392 = vmatpush.msra.mxu0 0.0
        %393 = vmatpush.msra.mxu0 %v376
        %394 = vmatpush.msra.mxu0 %v375
        %395 = vmatpush.msra.mxu0 %v374
        %396 = vmatpush.msra.mxu0 %v373
        %397 = vmatmul.f32.gmra.mxu0 %v307
        %v398 = vpop.f32.mrf.mxu0
        %v399 = vadd.f32 %v379, %v398
        %400 = vdwg.mxu0
        %v401 = vld [vmem:[%s5] sm:$0xf]
        %vm402 = vcmask 31744
        %v404 = vsel %vm402, %v372, 0
        %vm406 = vcmask 1043456
        %v408 = vsel %vm406, %v401, 0
        %410 = vmatpush.msra.mxu0 0.0
        %411 = vmatpush.msra.mxu0 0.0
        %412 = vmatpush.msra.mxu0 0.0
        %413 = vmatpush.msra.mxu0 0.0
        %414 = vmatpush.msra.mxu0 0.0
        %415 = vmatpush.msra.mxu0 0.0
        %416 = vmatpush.msra.mxu0 0.0
        %417 = vmatpush.msra.mxu0 0.0
        %418 = vmatpush.msra.mxu0 0.0
        %419 = vmatpush.msra.mxu0 0.0
        %420 = vmatpush.msra.mxu0 0.0
        %421 = vmatpush.msra.mxu0 0.0
        %422 = vmatpush.msra.mxu0 0.0
        %423 = vmatpush.msra.mxu0 0.0
        %424 = vmatpush.msra.mxu0 0.0
        %425 = vmatpush.msra.mxu0 %v408
        %426 = vmatmul.f32.gmra.mxu0 %v404
        %v427 = vpop.f32.mrf.mxu0
        %v428 = vadd.f32 0.0, %v427
        %429 = vdwg.mxu0
        %v430 = vmul.f32 %v399, %v428
        %432 = vrot.lane.b32.xlu0 %v430, 96
        %v433 = vpop.permute.xlu0 %432
        %v435 = vadd.f32 %v430, %v433
        %436 = vrot.lane.b32.xlu0 %v430, 64
        %v437 = vpop.permute.xlu0 %436
        %v439 = vadd.f32 %v435, %v437
        %440 = vrot.lane.b32.xlu0 %v430, 32
        %v441 = vpop.permute.xlu0 %440
        %v443 = vadd.f32 %v439, %v441
        %v444 = vld [vmem:[%s6] sm:$0x1]
        %v446 = vperm.slane %v444, 0
        %v448 = vadd.f32 %v443, %v446
        %449 = vst.msk [vmem:[%s295] sm:$0xff] %vm305, %v448
        %s450 = sand.u32 %s184, 1
        %s451 = scalar_lea.sflag [#allocation4], %s450
        %s452 = sand.u32 %s184, 1
        %s453 = smul.addr %s452, 8
        %s454 = scalar_lea.vmem [#allocation5], %s453
        // Predicated region
        $region53: #{tpu_custom_call.1} parent=47 // pred_check
          %p455 = pneg %p194
        $region54: #{tpu_custom_call.1} parent=47 // pred_check_branch
          %457 = sbr.rel (%p455) target = $region56
        $region55: #{tpu_custom_call.1} parent=47 // pred_region
          %459 = vsyncadd %s451, 0
          %s460 = smul.addr %s24, 8
          %s461 = scalar_lea.hbm %s7, %s460
          %s463 = sshll.u32 %s454, 4
          %s464 = int_to_ptr.vmem [resolvable:$true] %s463
          %s465 = sshll.u32 %s461, 4
          %s466 = int_to_ptr.hbm [resolvable:$true] %s465
          %468 = dma.vmem_to_hbm [thread:$0]  %s464, 128, %s466, %s451
        $region56: #{tpu_custom_call.1} parent=47 // pred_fallthru
          _
      $region48: #{tpu_custom_call.1} parent=5 // pred_fallthru
        _
      %p469 = scmp.le.s32.totalorder 2, %s19
      // Predicated region
      $region57: #{tpu_custom_call.1} parent=5 // pred_check
        %p470 = pneg %p469
      $region58: #{tpu_custom_call.1} parent=5 // pred_check_branch
        %472 = sbr.rel (%p470) target = $region60
      $region59: #{tpu_custom_call.1} parent=5 // pred_region
        %s473 = ssub.s32 %s19, 2
        // Predicated region
        $region61: #{tpu_custom_call.1} parent=59 // pred_check
          %p474 = pneg %p200
        $region62: #{tpu_custom_call.1} parent=59 // pred_check_branch
          %476 = sbr.rel (%p474) target = $region64
        $region63: #{tpu_custom_call.1} parent=59 // pred_region
          %s477 = sand.u32 %s185, 1
          %s478 = scalar_lea.sflag [#allocation4], %s477
          %s479 = sand.u32 %s185, 1
          %s480 = smul.addr %s479, 8
          %s481 = scalar_lea.vmem [#allocation5], %s480
          %483 = dma.done %s478, 128
        $region64: #{tpu_custom_call.1} parent=59 // pred_fallthru
          _
      $region60: #{tpu_custom_call.1} parent=5 // pred_fallthru
        _
    $region6: #{tpu_custom_call.1} parent=1 // loop_footer
      %s23 = sadd.s32 1, %s19
    $region7: #{tpu_custom_call.1} parent=1 // loop_footer_branch
      %18 = sbr.rel target = $region3
    $region8: #{tpu_custom_call.1} parent=1 // loop_exit
      _
    %484 = vsyncpa [#allocation3], 1
    %s485 = scalar_lea.sflag [#allocation3], 1
    %486 = vsyncpa %s485, 1
    %487 = vsyncpa [#allocation4], 1
    %s488 = scalar_lea.sflag [#allocation4], 1
    %489 = vsyncpa %s488, 1

</llo_original>
